<compile_context>
chip_gen: v6e
topology: v6e:2x2x1
jax: 0.10.0
libtpu: 0.0.40
codegen_flags: <defaults>
</compile_context>

<pallas_src>
import math
import functools

import jax
import jax.numpy as jnp
from jax.experimental import pallas as pl
from jax.experimental.pallas import tpu as pltpu


def _round_up(x, m):
    return (x + m - 1) // m * m


def _sublane_align(dtype):
    # f32 -> 8, bf16/f16 -> 16, int8/fp8 -> 32 (second-to-last dim min tile)
    itemsize = jnp.dtype(dtype).itemsize
    return max(8, 32 // itemsize)


def _split_for_megacore(M, N, tm, tn, align_m, tn_floor):
    """Guarantee >=2 blocks on the parallel (M, N) grid so both v7x TCs get work."""
    gm = _round_up(M, tm) // tm
    gn = _round_up(N, tn) // tn
    if gm * gn >= 2:
        return tm, tn
    half_m = _round_up((tm + 1) // 2, align_m)
    if 0 < half_m < tm and _round_up(M, half_m) // half_m >= 2:
        return half_m, tn
    half_n = _round_up((tn + 1) // 2, 128)
    if tn_floor <= half_n < tn and _round_up(N, half_n) // half_n >= 2:
        return tm, half_n
    return tm, tn


def _linear_kernel(x_ref, wt_ref, b_ref, o_ref, acc_ref, *, compute_dtype):
    # x_ref:  [tm, tk]  tile of the flattened input                 (VMEM)
    # wt_ref: [tk, tn]  tile of the pre-transposed weight W^T       (VMEM)
    # b_ref:  [1,  tn]  tile of the bias                            (VMEM)
    # o_ref:  [tm, tn]  output tile
    # acc_ref:[tm, tn]  f32 accumulator, resident across the K axis (scratch)
    k = pl.program_id(2)

    x = x_ref[...]
    w = wt_ref[...]
    if compute_dtype is not None:
        x = x.astype(compute_dtype)
        w = w.astype(compute_dtype)

    # Plain NN matmul: contracts lhs dim 1 with rhs dim 0 -> no RHS transpose needed.
    contrib = jnp.dot(x, w, preferred_element_type=jnp.float32)

    @pl.when(k == 0)
    def _():
        acc_ref[...] = contrib          # first K-step: write directly (no zero-init)

    @pl.when(k > 0)
    def _():
        acc_ref[...] += contrib

    @pl.when(k == pl.num_programs(2) - 1)
    def _():
        out = acc_ref[...] + b_ref[...].astype(jnp.float32)
        o_ref[...] = out.astype(o_ref.dtype)


def linear_forward(x, weight, bias=None, *, tm=512, tn=512, tk=None,
                   compute_dtype=None):
    """nn.Linear forward.

    x:      [..., in_dim]
    weight: [out_dim, in_dim]
    bias:   [out_dim] or None
    compute_dtype: optional (e.g. jnp.bfloat16) — cast MXU operands, keep f32 accum.
    returns [..., out_dim]
    """
    in_dim = x.shape[-1]
    out_dim = weight.shape[0]
    lead_shape = x.shape[:-1]

    x2d = x.reshape(-1, in_dim)
    M, K = x2d.shape
    N = out_dim

    if bias is None:
        bias = jnp.zeros((N,), dtype=x.dtype)

    in_itemsize = jnp.dtype(x.dtype).itemsize
    out_itemsize = in_itemsize

    # dtype-aware tile alignment / defaults
    align_m = _sublane_align(x.dtype)
    if tk is None:
        tk = 512 if in_itemsize >= 4 else 1024  # longer K tile for bf16/int8

    tn_floor = 256                                  # v6e/v7x MXU is 256 lanes wide
    tm = min(tm, _round_up(M, align_m))
    tn = min(tn, max(tn_floor, _round_up(N, 128)))
    tk = min(tk, _round_up(K, 128))

    # v7x megacore: make sure the parallel (M, N) grid has >= 2 blocks.
    tm, tn = _split_for_megacore(M, N, tm, tn, align_m, 128)

    Mp = _round_up(M, tm)
    Np = _round_up(N, tn)
    Kp = _round_up(K, tk)

    # Zero-pad to tile multiples (no-op when already aligned; padded rows/cols are
    # sliced off below, zeros contribute nothing to the contraction).
    if (Mp, Kp) != (M, K):
        x2d = jnp.pad(x2d, ((0, Mp - M), (0, Kp - K)))
    # Pre-transpose the weight ONCE (outside the per-grid-step hot path) -> NN layout.
    wT = weight.T                                   # [K, N]
    if (Kp, Np) != (K, N):
        wT = jnp.pad(wT, ((0, Kp - K), (0, Np - N)))
    bp = bias if Np == N else jnp.pad(bias, (0, Np - N))
    b2d = bp.reshape(1, Np)

    grid = (Mp // tm, Np // tn, Kp // tk)
    grid_m, grid_n, grid_k = grid

    # VMEM budget from the actual double-buffered tile footprint (+ headroom).
    footprint = (2 * (tm * tk + tk * tn) * in_itemsize   # x + W^T tiles, double-buffered
                 + 2 * tm * tn * out_itemsize            # output tiles, double-buffered
                 + tm * tn * 4                           # f32 accumulator
                 + 2 * tn * in_itemsize)                 # bias tiles
    vmem_limit = min(max(2 * footprint, 16 * 1024 * 1024), 32 * 1024 * 1024)

    cost = pl.CostEstimate(
        flops=2 * Mp * Np * Kp,
        transcendentals=0,
        bytes_accessed=(Mp * Kp * grid_n + Np * Kp * grid_m
                        + Np * grid_m) * in_itemsize + Mp * Np * out_itemsize,
    )

    out = pl.pallas_call(
        functools.partial(_linear_kernel, compute_dtype=compute_dtype),
        out_shape=jax.ShapeDtypeStruct((Mp, Np), x.dtype),
        grid_spec=pltpu.PrefetchScalarGridSpec(
            num_scalar_prefetch=0,
            grid=grid,
            in_specs=[
                pl.BlockSpec((tm, tk), lambda i, j, k: (i, k)),   # x tile
                pl.BlockSpec((tk, tn), lambda i, j, k: (k, j)),   # W^T tile (NN layout)
                pl.BlockSpec((1, tn), lambda i, j, k: (0, j)),    # bias tile
            ],
            out_specs=pl.BlockSpec((tm, tn), lambda i, j, k: (i, j)),
            scratch_shapes=[pltpu.VMEM((tm, tn), jnp.float32)],
        ),
        compiler_params=pltpu.CompilerParams(
            dimension_semantics=("parallel", "parallel", "arbitrary"),
            vmem_limit_bytes=vmem_limit,
        ),
        cost_estimate=cost,
    )(x2d, wT, b2d)

    out = out[:M, :N]
    return out.reshape(*lead_shape, out_dim)


def xavier_uniform(key, out_dim, in_dim, gain=1.0, dtype=jnp.float32):
    # matches nn.init.xavier_uniform_ on a weight of shape [out_dim, in_dim]
    limit = gain * math.sqrt(6.0 / (in_dim + out_dim))
    return jax.random.uniform(key, (out_dim, in_dim), dtype=dtype,
                              minval=-limit, maxval=limit)


if __name__ == "__main__":
    key = jax.random.PRNGKey(0)
    k_x, k_w, k_b = jax.random.split(key, 3)

    batch, seq, in_dim, out_dim = 2, 8, 32, 64

    x = jax.random.normal(k_x, (batch, seq, in_dim), dtype=jnp.float32)

    # deterministic parameter init (xavier_uniform, gain for 'linear' = 1.0)
    weight = xavier_uniform(k_w, out_dim, in_dim, gain=1.0)
    # nn.Linear default bias init: U(-1/sqrt(in_dim), 1/sqrt(in_dim))
    bound = 1.0 / math.sqrt(in_dim)
    bias = jax.random.uniform(k_b, (out_dim,), minval=-bound, maxval=bound,
                              dtype=jnp.float32)

    fwd = jax.jit(linear_forward)
    y = jax.block_until_ready(fwd(x, weight, bias))

    # correctness check against plain JAX reference
    y_ref = x @ weight.T + bias
    assert y.shape == (batch, seq, out_dim)
    assert jnp.allclose(y, y_ref, atol=1e-5, rtol=1e-5)

    # optional bf16 compute path (f32 accumulation kept) — looser tolerance
    fwd_bf16 = jax.jit(functools.partial(linear_forward, compute_dtype=jnp.bfloat16))
    y_bf16 = jax.block_until_ready(fwd_bf16(x, weight, bias))
    assert y_bf16.shape == (batch, seq, out_dim)
    assert jnp.allclose(y_bf16, y_ref, atol=0.3, rtol=0.1)

    # also exercise a shape that actually tiles (multiple grid steps in M and K,
    # and the megacore split kicking in)
    k_x2, k_w2, k_b2 = jax.random.split(jax.random.PRNGKey(1), 3)
    M2, K2, N2 = 512, 1024, 512
    x2 = jax.random.normal(k_x2, (M2, K2), dtype=jnp.float32)
    w2 = xavier_uniform(k_w2, N2, K2)
    b2 = jax.random.uniform(k_b2, (N2,), minval=-1e-2, maxval=1e-2, dtype=jnp.float32)
    y2 = jax.block_until_ready(fwd(x2, w2, b2))
    y2_ref = x2 @ w2.T + b2
    assert jnp.allclose(y2, y2_ref, atol=1e-3, rtol=1e-3)

    print("KERNEL_OK")
</pallas_src>

<mosaic_0001>
module attributes {stable_mosaic.version = 11 : i64} {
  func.func @_linear_kernel(%arg0: i32, %arg1: i32, %arg2: i32, %arg3: memref<8x128xf32, #tpu.memory_space<vmem>>, %arg4: memref<128x256xf32, #tpu.memory_space<vmem>>, %arg5: memref<1x256xf32, #tpu.memory_space<vmem>>, %arg6: memref<8x256xf32, #tpu.memory_space<vmem>>, %arg7: memref<8x256xf32, #tpu.memory_space<vmem>>) attributes {dimension_semantics = [#tpu.dimension_semantics<parallel>, #tpu.dimension_semantics<parallel>, #tpu.dimension_semantics<arbitrary>], iteration_bounds = array<i64: 2, 1, 1>, scalar_prefetch = 0 : i64, scratch_operands = 1 : i64, tpu.core_type = #tpu.core_type<tc>, window_params = [{transform_indices = @transform_0, window_bounds = array<i64: 8, 128>}, {transform_indices = @transform_1, window_bounds = array<i64: 128, 256>}, {transform_indices = @transform_2, window_bounds = array<i64: 1, 256>}, {transform_indices = @transform_3, window_bounds = array<i64: 8, 256>}]} {
    %c0 = arith.constant 0 : index
    %c0_0 = arith.constant 0 : index
    %0 = vector.load %arg3[%c0, %c0_0] : memref<8x128xf32, #tpu.memory_space<vmem>>, vector<8x128xf32>
    %c0_1 = arith.constant 0 : index
    %c0_2 = arith.constant 0 : index
    %1 = vector.load %arg4[%c0_1, %c0_2] : memref<128x256xf32, #tpu.memory_space<vmem>>, vector<128x256xf32>
    %cst = arith.constant dense<0.000000e+00> : vector<8x256xf32>
    %2 = tpu.matmul %0, %1, %cst {dimension_numbers = #tpu.dot_dimension_numbers<[1], [0], [0], [1], [0, 0, 1, 1], [], []>} : vector<8x128xf32>, vector<128x256xf32>, vector<8x256xf32> -> vector<8x256xf32>
    %c0_i32 = arith.constant 0 : i32
    %3 = arith.cmpi eq, %arg2, %c0_i32 : i32
    %4 = arith.extui %3 : i1 to i32
    %c0_i32_3 = arith.constant 0 : i32
    %5 = arith.cmpi ne, %4, %c0_i32_3 : i32
    scf.if %5 {
      %c0_8 = arith.constant 0 : index
      %c0_9 = arith.constant 0 : index
      %12 = vector.load %arg7[%c0_8, %c0_9] : memref<8x256xf32, #tpu.memory_space<vmem>>, vector<8x256xf32>
      tpu.vector_store %arg7[%c0_8, %c0_9], %2 {strides = array<i32>} : memref<8x256xf32, #tpu.memory_space<vmem>>, vector<8x256xf32>,
    } else {
    }
    %c0_i32_4 = arith.constant 0 : i32
    %6 = arith.cmpi sgt, %arg2, %c0_i32_4 : i32
    %7 = arith.extui %6 : i1 to i32
    %c0_i32_5 = arith.constant 0 : i32
    %8 = arith.cmpi ne, %7, %c0_i32_5 : i32
    scf.if %8 {
      %c0_8 = arith.constant 0 : index
      %c0_9 = arith.constant 0 : index
      %12 = vector.load %arg7[%c0_8, %c0_9] : memref<8x256xf32, #tpu.memory_space<vmem>>, vector<8x256xf32>
      %13 = arith.addf %12, %2 : vector<8x256xf32>
      %c0_10 = arith.constant 0 : index
      %c0_11 = arith.constant 0 : index
      %14 = vector.load %arg7[%c0_10, %c0_11] : memref<8x256xf32, #tpu.memory_space<vmem>>, vector<8x256xf32>
      tpu.vector_store %arg7[%c0_10, %c0_11], %13 {strides = array<i32>} : memref<8x256xf32, #tpu.memory_space<vmem>>, vector<8x256xf32>,
    } else {
    }
    %c0_i32_6 = arith.constant 0 : i32
    %9 = arith.cmpi eq, %arg2, %c0_i32_6 : i32
    %10 = arith.extui %9 : i1 to i32
    %c0_i32_7 = arith.constant 0 : i32
    %11 = arith.cmpi ne, %10, %c0_i32_7 : i32
    scf.if %11 {
      %c0_8 = arith.constant 0 : index
      %c0_9 = arith.constant 0 : index
      %12 = vector.load %arg7[%c0_8, %c0_9] : memref<8x256xf32, #tpu.memory_space<vmem>>, vector<8x256xf32>
      %c0_10 = arith.constant 0 : index
      %c0_11 = arith.constant 0 : index
      %13 = vector.load %arg5[%c0_10, %c0_11] : memref<1x256xf32, #tpu.memory_space<vmem>>, vector<1x256xf32>
      %14 = vector.broadcast %13 : vector<1x256xf32> to vector<8x256xf32>
      %15 = arith.addf %12, %14 : vector<8x256xf32>
      %c0_12 = arith.constant 0 : index
      %c0_13 = arith.constant 0 : index
      %16 = vector.load %arg6[%c0_12, %c0_13] : memref<8x256xf32, #tpu.memory_space<vmem>>, vector<8x256xf32>
      tpu.vector_store %arg6[%c0_12, %c0_13], %15 {strides = array<i32>} : memref<8x256xf32, #tpu.memory_space<vmem>>, vector<8x256xf32>,
    } else {
    }
    return
  }
  func.func @transform_0(%arg0: i32, %arg1: i32, %arg2: i32) -> (i32, i32) {
    %c0_i32 = arith.constant 0 : i32
    return %arg0, %arg2 : i32, i32
  }
  func.func @transform_1(%arg0: i32, %arg1: i32, %arg2: i32) -> (i32, i32) {
    %c0_i32 = arith.constant 0 : i32
    return %arg2, %arg1 : i32, i32
  }
  func.func @transform_2(%arg0: i32, %arg1: i32, %arg2: i32) -> (i32, i32) {
    %c0_i32 = arith.constant 0 : i32
    %c0_i32_0 = arith.constant 0 : i32
    return %c0_i32, %arg1 : i32, i32
  }
  func.func @transform_3(%arg0: i32, %arg1: i32, %arg2: i32) -> (i32, i32) {
    %c0_i32 = arith.constant 0 : i32
    return %arg0, %arg1 : i32, i32
  }
}

</mosaic_0001>

<llo_original>
// kernel: linear_forward.1
$region0: #{linear_forward.1}
  #allocation0 [shape = 'u32[]', space=smem, size = 0x4, offset = 0x4, fixed_abs, tag = 'smem constant byte address 0x4 - core index']
  #allocation1 [shape = 'u32[144,128]{1,0:T(1,128)}', space=vmem, size = 0x12000, scoped, tag = 'internal scratch']
  #allocation2 [shape = 'f32[8,256]{1,0:T(8,128)}', space=vmem, size = 0x2000, scoped, tag = 'scratch operand']
  %s0 = inlined_call_operand.vmem [shape: f32[16,128], index: 0, kind: input, shape index: {}]
  %s1 = inlined_call_operand.vmem [shape: f32[128,256], index: 1, kind: input, shape index: {}]
  %s2 = inlined_call_operand.vmem [shape: f32[1,256], index: 2, kind: input, shape index: {}]
  %s3 = inlined_call_operand.vmem [shape: f32[16,256], index: 3, kind: output, shape index: {}]
  %s4 = sld [smem:[#allocation0]]
  $region57: #{linear_forward.1} parent=0
    _
  %s6 = ssub.s32 1, %s4
  %s7 = scalar_select 0, %s6, %s4
  loop: start=0, step=1, limit=4
  $region2: #{linear_forward.1} parent=0 // loop_pre_header
    _
  $region3: #{linear_forward.1} parent=0 // loop_header
    %s9 = sphi 0, %s13
    %p10 = scmp.ge.s32.totalorder %s9, 4
    %s16 = sphi 0, %s35
    %s17 = sphi 0, %s31
    %s18 = sphi 0, %s27
    %s19 = sphi 0, %s16
    %s20 = sphi 0, %s17
    %s21 = sphi 0, %s18
    %s22 = sphi 0, %s19
    %s23 = sphi 0, %s20
    %s24 = sphi 0, %s21
    %s40 = sphi 0, %s42
    %s43 = sphi 0, %s40
    %s44 = sphi 0, %s43
    %s60 = sphi 0, %s44
    %s68 = sphi 0, %s70
    %s71 = sphi 0, %s68
    %s72 = sphi 0, %s71
    %s88 = sphi 0, %s72
    %s94 = sphi 0, %s96
    %s97 = sphi 0, %s94
    %s98 = sphi 0, %s97
    %s114 = sphi 0, %s98
    %s122 = sphi 0, %s124
    %s125 = sphi 0, %s122
    %s126 = sphi 0, %s125
    %s142 = sphi 0, %s126
  $region4: #{linear_forward.1} parent=0 // loop_header_branch
    %12 = sbr.rel (%p10) target = $region8
  $region5: #{linear_forward.1} parent=0 // loop_body
    %s14 = ssub.s32 %s9, 1
    %s15 = ssub.s32 %s9, 2
    %s25 = sadd.s32 1, %s18
    %p26 = scmp.ge.s32.totalorder %s25, 1
    %s27 = scalar_select %p26, 0, %s25
    %s28 = sadd.s32 1, %s17
    %s29 = scalar_select %p26, %s28, %s17
    %p30 = scmp.ge.s32.totalorder %s29, 1
    %s31 = scalar_select %p30, 0, %s29
    %s32 = sadd.s32 1, %s16
    %s33 = scalar_select %p30, %s32, %s16
    %p34 = scmp.ge.s32.totalorder %s33, 2
    %s35 = scalar_select %p34, 0, %s33
    %s36 = ssub.s32 %s16, %s35
    %s37 = ssub.s32 %s18, %s27
    %s38 = sor.u32 %s36, %s37
    %p39 = scmp.eq.s32.totalorder %s38, 0
    %s41 = sadd.s32 %s40, 1
    %s42 = scalar_select %p39, %s40, %s41
    %p45 = pneg %p39
    %p46 = scmp.eq.s32.totalorder %s9, 1
    %p47 = por %p45, %p46
    %p48 = scmp.ne.s32.totalorder %s40, %s43
    %p49 = scmp.eq.s32.totalorder %s9, 0
    %p50 = por %p48, %p49
    %p51 = scmp.ne.s32.totalorder %s40, %s43
    %p52 = scmp.eq.s32.totalorder %s14, 1
    %p53 = por %p51, %p52
    %p54 = scmp.ne.s32.totalorder %s43, %s44
    %p55 = scmp.eq.s32.totalorder %s14, 0
    %p56 = por %p54, %p55
    %p57 = scmp.ne.s32.totalorder %s43, %s44
    %p58 = scmp.eq.s32.totalorder %s15, 1
    %p59 = por %p57, %p58
    %p61 = scmp.ne.s32.totalorder %s44, %s60
    %p62 = scmp.eq.s32.totalorder %s15, 0
    %p63 = por %p61, %p62
    %s64 = ssub.s32 %s18, %s27
    %s65 = ssub.s32 %s17, %s31
    %s66 = sor.u32 %s64, %s65
    %p67 = scmp.eq.s32.totalorder %s66, 0
    %s69 = sadd.s32 %s68, 1
    %s70 = scalar_select %p67, %s68, %s69
    %p73 = pneg %p67
    %p74 = scmp.eq.s32.totalorder %s9, 1
    %p75 = por %p73, %p74
    %p76 = scmp.ne.s32.totalorder %s68, %s71
    %p77 = scmp.eq.s32.totalorder %s9, 0
    %p78 = por %p76, %p77
    %p79 = scmp.ne.s32.totalorder %s68, %s71
    %p80 = scmp.eq.s32.totalorder %s14, 1
    %p81 = por %p79, %p80
    %p82 = scmp.ne.s32.totalorder %s71, %s72
    %p83 = scmp.eq.s32.totalorder %s14, 0
    %p84 = por %p82, %p83
    %p85 = scmp.ne.s32.totalorder %s71, %s72
    %p86 = scmp.eq.s32.totalorder %s15, 1
    %p87 = por %p85, %p86
    %p89 = scmp.ne.s32.totalorder %s72, %s88
    %p90 = scmp.eq.s32.totalorder %s15, 0
    %p91 = por %p89, %p90
    %s92 = ssub.s32 %s17, %s31
    %p93 = scmp.eq.s32.totalorder %s92, 0
    %s95 = sadd.s32 %s94, 1
    %s96 = scalar_select %p93, %s94, %s95
    %p99 = pneg %p93
    %p100 = scmp.eq.s32.totalorder %s9, 1
    %p101 = por %p99, %p100
    %p102 = scmp.ne.s32.totalorder %s94, %s97
    %p103 = scmp.eq.s32.totalorder %s9, 0
    %p104 = por %p102, %p103
    %p105 = scmp.ne.s32.totalorder %s94, %s97
    %p106 = scmp.eq.s32.totalorder %s14, 1
    %p107 = por %p105, %p106
    %p108 = scmp.ne.s32.totalorder %s97, %s98
    %p109 = scmp.eq.s32.totalorder %s14, 0
    %p110 = por %p108, %p109
    %p111 = scmp.ne.s32.totalorder %s97, %s98
    %p112 = scmp.eq.s32.totalorder %s15, 1
    %p113 = por %p111, %p112
    %p115 = scmp.ne.s32.totalorder %s98, %s114
    %p116 = scmp.eq.s32.totalorder %s15, 0
    %p117 = por %p115, %p116
    %s118 = ssub.s32 %s16, %s35
    %s119 = ssub.s32 %s17, %s31
    %s120 = sor.u32 %s118, %s119
    %p121 = scmp.eq.s32.totalorder %s120, 0
    %s123 = sadd.s32 %s122, 1
    %s124 = scalar_select %p121, %s122, %s123
    %p127 = pneg %p121
    %p128 = scmp.eq.s32.totalorder %s9, 1
    %p129 = por %p127, %p128
    %p130 = scmp.ne.s32.totalorder %s122, %s125
    %p131 = scmp.eq.s32.totalorder %s9, 0
    %p132 = por %p130, %p131
    %p133 = scmp.ne.s32.totalorder %s122, %s125
    %p134 = scmp.eq.s32.totalorder %s14, 1
    %p135 = por %p133, %p134
    %p136 = scmp.ne.s32.totalorder %s125, %s126
    %p137 = scmp.eq.s32.totalorder %s14, 0
    %p138 = por %p136, %p137
    %p139 = scmp.ne.s32.totalorder %s125, %s126
    %p140 = scmp.eq.s32.totalorder %s15, 1
    %p141 = por %p139, %p140
    %p143 = scmp.ne.s32.totalorder %s126, %s142
    %p144 = scmp.eq.s32.totalorder %s15, 0
    %p145 = por %p143, %p144
    %p146 = scmp.le.s32.totalorder 1, %s9
    %p147 = scmp.lt.s32.totalorder %s9, 3
    %p148 = pnand %p146, %p147
    %p149 = pneg %p148
    // Predicated region
    $region9: #{linear_forward.1} parent=5 // pred_check
      _
    $region10: #{linear_forward.1} parent=5 // pred_check_branch
      %151 = sbr.rel (%p148) target = $region12
    $region11: #{linear_forward.1} parent=5 // pred_region
      %s152 = ssub.s32 %s9, 1
      // Predicated region
      $region13: #{linear_forward.1} parent=11 // pred_check
        %p153 = pneg %p84
      $region14: #{linear_forward.1} parent=11 // pred_check_branch
        %155 = sbr.rel (%p153) target = $region16
      $region15: #{linear_forward.1} parent=11 // pred_region
        %s156 = smul.u32 16, %s21
        %s157 = smul.u32 2, %s20
        %p158 = scmp.lt.s32.totalorder %s156, 15
        %s159 = scalar_select %p158, %s156, 15
        %p160 = scmp.lt.s32.totalorder %s157, 1
        %s161 = scalar_select %p160, %s157, 1
        %s162 = smul.addr %s159, 2
        %s163 = sadd.s32 %s161, %s162
        %s164 = smul.addr %s163, 8
        %s165 = scalar_lea.vmem %s1, %s164
        %s166 = smul.u32 16, %s21
        %s167 = smul.u32 2, %s20
      $region16: #{linear_forward.1} parent=11 // pred_fallthru
        _
      // Predicated region
      $region17: #{linear_forward.1} parent=11 // pred_check
        %p168 = pneg %p110
      $region18: #{linear_forward.1} parent=11 // pred_check_branch
        %170 = sbr.rel (%p168) target = $region20
      $region19: #{linear_forward.1} parent=11 // pred_region
        %s171 = smul.u32 2, %s20
        %p172 = scmp.lt.s32.totalorder %s171, 1
        %s173 = scalar_select %p172, %s171, 1
        %s174 = scalar_lea.vmem %s2, %s173
        %s175 = smul.u32 2, %s20
      $region20: #{linear_forward.1} parent=11 // pred_fallthru
        _
    $region12: #{linear_forward.1} parent=5 // pred_fallthru
      _
    %p176 = scmp.lt.s32.totalorder %s9, 2
    // Predicated region
    $region21: #{linear_forward.1} parent=5 // pred_check
      %p177 = pneg %p176
    $region22: #{linear_forward.1} parent=5 // pred_check_branch
      %179 = sbr.rel (%p177) target = $region24
    $region23: #{linear_forward.1} parent=5 // pred_region
      // Predicated region
      $region25: #{linear_forward.1} parent=23 // pred_check
        %p180 = pneg %p50
      $region26: #{linear_forward.1} parent=23 // pred_check_branch
        %182 = sbr.rel (%p180) target = $region28
      $region27: #{linear_forward.1} parent=23 // pred_region
        %p183 = scmp.lt.s32.totalorder %s16, 1
        %s184 = scalar_select %p183, %s16, 1
        %p185 = scmp.lt.s32.totalorder %s18, 0
        %s186 = scalar_select %p185, %s18, 0
        %s187 = sadd.s32 %s186, %s184
        %s188 = smul.addr %s187, 8
        %s189 = scalar_lea.vmem %s0, %s188
      $region28: #{linear_forward.1} parent=23 // pred_fallthru
        _
    $region24: #{linear_forward.1} parent=5 // pred_fallthru
      _
    %p190 = scmp.le.s32.totalorder 1, %s9
    %p191 = scmp.lt.s32.totalorder %s9, 3
    %p192 = pnand %p190, %p191
    %p193 = pneg %p192
    // Predicated region
    $region29: #{linear_forward.1} parent=5 // pred_check
      _
    $region30: #{linear_forward.1} parent=5 // pred_check_branch
      %195 = sbr.rel (%p192) target = $region32
    $region31: #{linear_forward.1} parent=5 // pred_region
      %s196 = ssub.s32 %s9, 1
      %p197 = scmp.lt.s32.totalorder %s19, 1
      %s198 = scalar_select %p197, %s19, 1
      %p199 = scmp.lt.s32.totalorder %s21, 0
      %s200 = scalar_select %p199, %s21, 0
      %s201 = sadd.s32 %s200, %s198
      %s202 = smul.addr %s201, 8
      %s203 = scalar_lea.vmem %s0, %s202
      %p204 = pneg %p56
      %p205 = pneg %p53
      %s206 = smul.u32 16, %s21
      %s207 = smul.u32 2, %s20
      %p208 = scmp.lt.s32.totalorder %s206, 15
      %s209 = scalar_select %p208, %s206, 15
      %p210 = scmp.lt.s32.totalorder %s207, 1
      %s211 = scalar_select %p210, %s207, 1
      %s212 = smul.addr %s209, 2
      %s213 = sadd.s32 %s211, %s212
      %s214 = smul.addr %s213, 8
      %s215 = scalar_lea.vmem %s1, %s214
      %p216 = pneg %p84
      %p217 = pneg %p81
      %s218 = smul.u32 2, %s20
      %p219 = scmp.lt.s32.totalorder %s218, 1
      %s220 = scalar_select %p219, %s218, 1
      %s221 = scalar_lea.vmem %s2, %s220
      %p222 = pneg %p110
      %p223 = pneg %p107
      %p224 = pneg %p138
      %p225 = pneg %p135
      %s226 = smul.u32 2, %s20
      %p227 = scmp.lt.s32.totalorder %s19, 1
      %s228 = scalar_select %p227, %s19, 1
      %p229 = scmp.lt.s32.totalorder %s226, 1
      %s230 = scalar_select %p229, %s226, 1
      %s231 = smul.addr %s228, 2
      %s232 = sadd.s32 %s230, %s231
      %s233 = smul.addr %s232, 8
      %s234 = scalar_lea.vmem %s3, %s233
      %p235 = scmp.lt.s32.totalorder %s19, 1
      %s236 = scalar_select %p235, %s19, 1
      %p237 = scmp.lt.s32.totalorder %s21, 0
      %s238 = scalar_select %p237, %s21, 0
      %s239 = sadd.s32 %s238, %s236
      %s240 = smul.addr %s239, 8
      %s241 = scalar_lea.vmem %s0, %s240
      %s242 = smul.u32 16, %s21
      %s243 = smul.u32 2, %s20
      %p244 = scmp.lt.s32.totalorder %s242, 15
      %s245 = scalar_select %p244, %s242, 15
      %p246 = scmp.lt.s32.totalorder %s243, 1
      %s247 = scalar_select %p246, %s243, 1
      %s248 = smul.addr %s245, 2
      %s249 = sadd.s32 %s247, %s248
      %s250 = smul.addr %s249, 8
      %s251 = scalar_lea.vmem %s1, %s250
      %s252 = smul.u32 16, %s21
      %s253 = smul.u32 2, %s20
      %s254 = smul.u32 2, %s20
      %p255 = scmp.lt.s32.totalorder %s254, 1
      %s256 = scalar_select %p255, %s254, 1
      %s257 = scalar_lea.vmem %s2, %s256
      %s258 = smul.u32 2, %s20
      %s259 = smul.u32 2, %s20
      %p260 = scmp.lt.s32.totalorder %s19, 1
      %s261 = scalar_select %p260, %s19, 1
      %p262 = scmp.lt.s32.totalorder %s259, 1
      %s263 = scalar_select %p262, %s259, 1
      %s264 = smul.addr %s261, 2
      %s265 = sadd.s32 %s263, %s264
      %s266 = smul.addr %s265, 8
      %s267 = scalar_lea.vmem %s3, %s266
      %s268 = smul.u32 2, %s20
      %v269 = vld [vmem:[%s241] sm:$0xff]
      %v270 = vld [vmem:[%s251] sm:$0xff]
      %v271 = vld [vmem:[%s251 + $0x8] sm:$0xff]
      %v272 = vld [vmem:[%s251 + $0x10] sm:$0xff]
      %v273 = vld [vmem:[%s251 + $0x18] sm:$0xff]
      %v274 = vld [vmem:[%s251 + $0x20] sm:$0xff]
      %v275 = vld [vmem:[%s251 + $0x28] sm:$0xff]
      %v276 = vld [vmem:[%s251 + $0x30] sm:$0xff]
      %v277 = vld [vmem:[%s251 + $0x38] sm:$0xff]
      %v278 = vld [vmem:[%s251 + $0x40] sm:$0xff]
      %v279 = vld [vmem:[%s251 + $0x48] sm:$0xff]
      %v280 = vld [vmem:[%s251 + $0x50] sm:$0xff]
      %v281 = vld [vmem:[%s251 + $0x58] sm:$0xff]
      %v282 = vld [vmem:[%s251 + $0x60] sm:$0xff]
      %v283 = vld [vmem:[%s251 + $0x68] sm:$0xff]
      %v284 = vld [vmem:[%s251 + $0x70] sm:$0xff]
      %v285 = vld [vmem:[%s251 + $0x78] sm:$0xff]
      %v286 = vld [vmem:[%s251 + $0x80] sm:$0xff]
      %v287 = vld [vmem:[%s251 + $0x88] sm:$0xff]
      %v288 = vld [vmem:[%s251 + $0x90] sm:$0xff]
      %v289 = vld [vmem:[%s251 + $0x98] sm:$0xff]
      %v290 = vld [vmem:[%s251 + $0xa0] sm:$0xff]
      %v291 = vld [vmem:[%s251 + $0xa8] sm:$0xff]
      %v292 = vld [vmem:[%s251 + $0xb0] sm:$0xff]
      %v293 = vld [vmem:[%s251 + $0xb8] sm:$0xff]
      %v294 = vld [vmem:[%s251 + $0xc0] sm:$0xff]
      %v295 = vld [vmem:[%s251 + $0xc8] sm:$0xff]
      %v296 = vld [vmem:[%s251 + $0xd0] sm:$0xff]
      %v297 = vld [vmem:[%s251 + $0xd8] sm:$0xff]
      %v298 = vld [vmem:[%s251 + $0xe0] sm:$0xff]
      %v299 = vld [vmem:[%s251 + $0xe8] sm:$0xff]
      %v300 = vld [vmem:[%s251 + $0xf0] sm:$0xff]
      %v301 = vld [vmem:[%s251 + $0xf8] sm:$0xff]
      %302 = vmatprep.subr.mxu0 %v301
      %303 = vmatpush1.msra.mxu0 %v300
      %304 = vmatprep.subr.mxu0 %v299
      %305 = vmatpush1.msra.mxu0 %v298
      %306 = vmatprep.subr.mxu0 %v297
      %307 = vmatpush1.msra.mxu0 %v296
      %308 = vmatprep.subr.mxu0 %v295
      %309 = vmatpush1.msra.mxu0 %v294
      %310 = vmatprep.subr.mxu0 %v293
      %311 = vmatpush1.msra.mxu0 %v292
      %312 = vmatprep.subr.mxu0 %v291
      %313 = vmatpush1.msra.mxu0 %v290
      %314 = vmatprep.subr.mxu0 %v289
      %315 = vmatpush1.msra.mxu0 %v288
      %316 = vmatprep.subr.mxu0 %v287
      %317 = vmatpush1.msra.mxu0 %v286
      %318 = vmatprep.subr.mxu0 %v285
      %319 = vmatpush1.msra.mxu0 %v284
      %320 = vmatprep.subr.mxu0 %v283
      %321 = vmatpush1.msra.mxu0 %v282
      %322 = vmatprep.subr.mxu0 %v281
      %323 = vmatpush1.msra.mxu0 %v280
      %324 = vmatprep.subr.mxu0 %v279
      %325 = vmatpush1.msra.mxu0 %v278
      %326 = vmatprep.subr.mxu0 %v277
      %327 = vmatpush1.msra.mxu0 %v276
      %328 = vmatprep.subr.mxu0 %v275
      %329 = vmatpush1.msra.mxu0 %v274
      %330 = vmatprep.subr.mxu0 %v273
      %331 = vmatpush1.msra.mxu0 %v272
      %332 = vmatprep.subr.mxu0 %v271
      %333 = vmatpush1.msra.mxu0 %v270
      %334 = vmatprep.subr.mxu0 0.0
      %335 = vmatpush2.msra.mxu0 0.0
      %336 = vmatprep.subr.mxu0 0.0
      %337 = vmatpush2.msra.mxu0 0.0
      %338 = vmatprep.subr.mxu0 0.0
      %339 = vmatpush2.msra.mxu0 0.0
      %340 = vmatprep.subr.mxu0 0.0
      %341 = vmatpush2.msra.mxu0 0.0
      %342 = vmatprep.subr.mxu0 0.0
      %343 = vmatpush2.msra.mxu0 0.0
      %344 = vmatprep.subr.mxu0 0.0
      %345 = vmatpush2.msra.mxu0 0.0
      %346 = vmatprep.subr.mxu0 0.0
      %347 = vmatpush2.msra.mxu0 0.0
      %348 = vmatprep.subr.mxu0 0.0
      %349 = vmatpush2.msra.mxu0 0.0
      %350 = vmatprep.subr.mxu0 0.0
      %351 = vmatpush2.msra.mxu0 0.0
      %352 = vmatprep.subr.mxu0 0.0
      %353 = vmatpush2.msra.mxu0 0.0
      %354 = vmatprep.subr.mxu0 0.0
      %355 = vmatpush2.msra.mxu0 0.0
      %356 = vmatprep.subr.mxu0 0.0
      %357 = vmatpush2.msra.mxu0 0.0
      %358 = vmatprep.subr.mxu0 0.0
      %359 = vmatpush2.msra.mxu0 0.0
      %360 = vmatprep.subr.mxu0 0.0
      %361 = vmatpush2.msra.mxu0 0.0
      %362 = vmatprep.subr.mxu0 0.0
      %363 = vmatpush2.msra.mxu0 0.0
      %364 = vmatprep.subr.mxu0 0.0
      %365 = vmatpush2.msra.mxu0 0.0
      %366 = vmatprep.mubr.f32.mxu0 0.0
      %367 = vmatmul.mubr.f32.gmra.mxu0 %v269
      %v368 = vpop.f32.mrf.mxu0
      %v369 = vadd.f32 0.0, %v368
      %v370 = vpop.f32.mrf.mxu0
      %v371 = vadd.f32 0.0, %v370
      %372 = vdwg.mxu0
      %p373 = scmp.eq.s32.totalorder %s21, 0
      // Predicated region
      $region33: #{linear_forward.1} parent=31 // pred_check
        %p374 = pneg %p373
      $region34: #{linear_forward.1} parent=31 // pred_check_branch
        %376 = sbr.rel (%p374) target = $region36
      $region35: #{linear_forward.1} parent=31 // pred_region
        %377 = vst [vmem:[#allocation2] sm:$0xff] %v369
        %378 = vst [vmem:[#allocation2 + $0x8] sm:$0xff] %v371
      $region36: #{linear_forward.1} parent=31 // pred_fallthru
        _
      %p379 = scmp.gt.s32.totalorder %s21, 0
      // Predicated region
      $region37: #{linear_forward.1} parent=31 // pred_check
        %p380 = pneg %p379
      $region38: #{linear_forward.1} parent=31 // pred_check_branch
        %382 = sbr.rel (%p380) target = $region40
      $region39: #{linear_forward.1} parent=31 // pred_region
        %v383 = vld [vmem:[#allocation2] sm:$0xff]
        %v384 = vld [vmem:[#allocation2 + $0x8] sm:$0xff]
        %v385 = vadd.f32 %v383, %v369
        %v386 = vadd.f32 %v384, %v371
        %387 = vst [vmem:[#allocation2] sm:$0xff] %v385
        %388 = vst [vmem:[#allocation2 + $0x8] sm:$0xff] %v386
      $region40: #{linear_forward.1} parent=31 // pred_fallthru
        _
      // Predicated region
      $region41: #{linear_forward.1} parent=31 // pred_check
        %p389 = pneg %p373
      $region42: #{linear_forward.1} parent=31 // pred_check_branch
        %391 = sbr.rel (%p389) target = $region44
      $region43: #{linear_forward.1} parent=31 // pred_region
        %v392 = vld [vmem:[#allocation2] sm:$0xff]
        %v393 = vld [vmem:[#allocation2 + $0x8] sm:$0xff]
        %v394 = vld [vmem:[%s257] sm:$0x3]
        %v396 = vlaneseq
        %v397 = vshrl.u32 %v396, 7
        %v398 = vsub.s32 0, %v397
        %v399 = vrot.slane %v394, %v398
        %v400 = vlaneseq
        %v401 = vshrl.u32 %v400, 7
        %v402 = vsub.s32 1, %v401
        %v403 = vrot.slane %v394, %v402
        %v406 = vadd.f32 %v392, %v399
        %v407 = vadd.f32 %v393, %v403
        %408 = vst [vmem:[%s267] sm:$0xff] %v406
        %409 = vst [vmem:[%s267 + $0x8] sm:$0xff] %v407
      $region44: #{linear_forward.1} parent=31 // pred_fallthru
        _
      %s410 = smul.u32 2, %s20
      %p411 = scmp.lt.s32.totalorder %s19, 1
      %s412 = scalar_select %p411, %s19, 1
      %p413 = scmp.lt.s32.totalorder %s410, 1
      %s414 = scalar_select %p413, %s410, 1
      %s415 = smul.addr %s412, 2
      %s416 = sadd.s32 %s414, %s415
      %s417 = smul.addr %s416, 8
      %s418 = scalar_lea.vmem %s3, %s417
      // Predicated region
      $region45: #{linear_forward.1} parent=31 // pred_check
        %p419 = pneg %p135
      $region46: #{linear_forward.1} parent=31 // pred_check_branch
        %421 = sbr.rel (%p419) target = $region48
      $region47: #{linear_forward.1} parent=31 // pred_region
        %s422 = smul.u32 2, %s20
      $region48: #{linear_forward.1} parent=31 // pred_fallthru
        _
    $region32: #{linear_forward.1} parent=5 // pred_fallthru
      _
    %p423 = scmp.le.s32.totalorder 2, %s9
    // Predicated region
    $region49: #{linear_forward.1} parent=5 // pred_check
      %p424 = pneg %p423
    $region50: #{linear_forward.1} parent=5 // pred_check_branch
      %426 = sbr.rel (%p424) target = $region52
    $region51: #{linear_forward.1} parent=5 // pred_region
      %s427 = ssub.s32 %s9, 2
      // Predicated region
      $region53: #{linear_forward.1} parent=51 // pred_check
        %p428 = pneg %p141
      $region54: #{linear_forward.1} parent=51 // pred_check_branch
        %430 = sbr.rel (%p428) target = $region56
      $region55: #{linear_forward.1} parent=51 // pred_region
        %s431 = smul.u32 2, %s23
        %p432 = scmp.lt.s32.totalorder %s22, 1
        %s433 = scalar_select %p432, %s22, 1
        %p434 = scmp.lt.s32.totalorder %s431, 1
        %s435 = scalar_select %p434, %s431, 1
        %s436 = smul.addr %s433, 2
        %s437 = sadd.s32 %s435, %s436
        %s438 = smul.addr %s437, 8
        %s439 = scalar_lea.vmem %s3, %s438
      $region56: #{linear_forward.1} parent=51 // pred_fallthru
        _
    $region52: #{linear_forward.1} parent=5 // pred_fallthru
      _
  $region6: #{linear_forward.1} parent=0 // loop_footer
    %s13 = sadd.s32 1, %s9
  $region7: #{linear_forward.1} parent=0 // loop_footer_branch
    %8 = sbr.rel target = $region3
  $region8: #{linear_forward.1} parent=0 // loop_exit
    _

</llo_original>
